<compile_context>
chip_gen: v5e
topology: v5e:2x2
jax: 0.10.0
libtpu: 0.0.40
codegen_flags: <defaults>
</compile_context>

<pallas_src>
import functools
import itertools

import numpy as np
import jax
import jax.numpy as jnp
from jax import lax
from jax.experimental import pallas as pl
from jax.experimental.pallas import tpu as pltpu

try:  # host-side Hungarian assignment
    from scipy.optimize import linear_sum_assignment as _scipy_lsa
except Exception:  # pragma: no cover
    _scipy_lsa = None

ALPHA = 0.8
BETA = 0.2


def _round_up(x, m):
    return ((x + m - 1) // m) * m


def _matcher_kernel(pred_ref, tgt_ref, prob_ref, t2_ref, c_ref, num_acc, p2_acc,
                    *, l_valid, tk):
    # pred_ref: (tm, tk)      pred mask logits, native dtype (f32 or bf16), streamed per (i, k)
    # tgt_ref : (T_pad, tk)   bf16 target masks (zero-padded), streamed per k
    # prob_ref: (tm, T_pad)   f32 matching probabilities (class-gathered), resident across k
    # t2_ref  : (1, T_pad)    f32 precomputed sum(tgt^2) per target, resident
    # c_ref   : (tm, T_pad)   f32 output cost tile (written at k == last)
    # num_acc : (tm, T_pad)   f32 scratch accumulator for sigmoid(pred) @ tgt^T
    # p2_acc  : (tm, 1)       f32 scratch accumulator for sum(sigmoid(pred)^2)
    k = pl.program_id(1)

    @pl.when(k == 0)
    def _():
        num_acc[...] = jnp.zeros_like(num_acc)
        p2_acc[...] = jnp.zeros_like(p2_acc)

    x = pred_ref[...]
    if l_valid % tk != 0:
        # Mask the H*W remainder of the last chunk (drives sigmoid -> 0, so it contributes
        # nothing to p2 or the matmul).  Static no-op when H*W % tk == 0.
        col = k * tk + lax.broadcasted_iota(jnp.int32, x.shape, 1)
        x = jnp.where(col < l_valid, x, jnp.asarray(-1e4, x.dtype))

    if x.dtype == jnp.bfloat16:
        # bf16 pred logits: run the EUP in bf16 (2x throughput on v6e/v7x), upcast only for p2.
        p_lo = jax.nn.sigmoid(x)
        p_hi = p_lo.astype(jnp.float32)
    else:
        p_hi = jax.nn.sigmoid(x.astype(jnp.float32))
        p_lo = p_hi.astype(jnp.bfloat16)

    p2_acc[...] += jnp.sum(p_hi * p_hi, axis=-1, keepdims=True)
    num_acc[...] += lax.dot_general(                       # bf16 operands on the MXU, f32 accum
        p_lo, tgt_ref[...], (((1,), (1,)), ((), ())),
        preferred_element_type=jnp.float32)

    @pl.when(k == pl.num_programs(1) - 1)
    def _():
        denom = p2_acc[...] + t2_ref[...] + 1e-4
        # EUP reciprocal (approx ~1e-3 rel err; negligible for maximize-assignment).
        score = (2.0 * num_acc[...]) * pl.reciprocal(denom, approx=True)
        # Fused power combine: score**alpha * prob**beta == exp(a*log(score)+b*log(prob)).
        # score/prob == 0 (padded columns) -> log == -inf -> exp == 0, matching pow semantics.
        c_ref[...] = jnp.exp(ALPHA * jnp.log(score) + BETA * jnp.log(prob_ref[...]))


def compute_cost_matrix(pred_masks, pred_logits_sig, tgt_masks_resized, tgt_ids,
                        tm=256, tk=512):
    """Returns C with shape (B, N, T) = dice_score**alpha * matching_prob**beta."""
    B, N, H, W = pred_masks.shape
    T = int(tgt_masks_resized.shape[0])
    L = H * W
    BN = B * N

    # Lane-dense target padding; 256 granularity once T > 128 (v6e/v7x MXU is 256 wide on N).
    T_pad = _round_up(max(T, 1), 128)
    if T_pad > 128:
        T_pad = _round_up(T_pad, 256)

    tm = max(16, min(tm, _round_up(BN, 16)))      # query-tile rows (multiple of 16)
    tk = max(128, min(tk, _round_up(L, 128)))     # pixel-reduction chunk (multiple of 128)
    n_i = pl.cdiv(BN, tm)
    n_k = pl.cdiv(L, tk)
    L_pad = n_k * tk

    # pred: NO padded/cast copy — a free reshape; the kernel streams (tm, tk) blocks directly
    # from the model output and masks the H*W remainder in-register.
    pred_flat = pred_masks.reshape(BN, L)

    # tgt is tiny (T rows): wrapper pad/cast is cheap; zero L-padding keeps the MXU contraction
    # clean on the (possibly partial) last K chunk.  t2 hoisted here in f32.
    tgt_flat = tgt_masks_resized.reshape(T, L).astype(jnp.float32)
    tgt_flat = jnp.pad(tgt_flat, ((0, T_pad - T), (0, L_pad - L)))
    t2 = jnp.sum(tgt_flat * tgt_flat, axis=-1).reshape(1, T_pad)
    tgt_bf16 = tgt_flat.astype(jnp.bfloat16)

    # matching_prob = pred_logits.sigmoid().view(B*N, -1)[:, tgt_ids]  (gather = glue)
    matching_prob = jnp.take(pred_logits_sig.reshape(BN, -1), tgt_ids, axis=1).astype(jnp.float32)
    matching_prob = jnp.pad(matching_prob, ((0, 0), (0, T_pad - T)))

    kernel = functools.partial(_matcher_kernel, l_valid=L, tk=tk)
    C = pl.pallas_call(
        kernel,
        out_shape=jax.ShapeDtypeStruct((BN, T_pad), jnp.float32),
        grid_spec=pltpu.PrefetchScalarGridSpec(
            num_scalar_prefetch=0,
            grid=(n_i, n_k),                                      # reduction axis trailing
            in_specs=[
                pl.BlockSpec((tm, tk), lambda i, k: (i, k)),      # pred block (streamed, native dtype)
                pl.BlockSpec((T_pad, tk), lambda i, k: (0, k)),   # tgt block (streamed over k)
                pl.BlockSpec((tm, T_pad), lambda i, k: (i, 0)),   # matching_prob (resident over k)
                pl.BlockSpec((1, T_pad), lambda i, k: (0, 0)),    # t2 (resident)
            ],
            out_specs=pl.BlockSpec((tm, T_pad), lambda i, k: (i, 0)),
            scratch_shapes=[
                pltpu.VMEM((tm, T_pad), jnp.float32),             # num accumulator
                pltpu.VMEM((tm, 1), jnp.float32),                 # p2 accumulator
            ],
        ),
        compiler_params=pltpu.CompilerParams(
            # On v7x, pltpu.CORE_PARALLEL on the query axis would split the two TensorCores;
            # kept as the portable "parallel" here since it is single-TC-safe on v5e/v6e.
            dimension_semantics=("parallel", "arbitrary"),
            vmem_limit_bytes=48 * 1024 * 1024,   # safe on v5e/v6e (128 MiB) and v7x (64 MiB)
        ),
    )(pred_flat, tgt_bf16, matching_prob, t2)

    return C[:, :T].reshape(B, N, T)


def _linear_sum_assignment_max(c):
    # Host-side Hungarian assignment; scipy if available, exact brute force for tiny problems.
    # TODO(synk): linear_sum_assignment has no Pallas equivalent; runs on host.
    n_rows, n_cols = c.shape
    if n_cols == 0:
        return np.array([], dtype=np.int64), np.array([], dtype=np.int64)
    if _scipy_lsa is not None:
        r, k = _scipy_lsa(c, maximize=True)
        return r.astype(np.int64), k.astype(np.int64)
    best, best_rows = -np.inf, None
    for rows in itertools.permutations(range(n_rows), n_cols):
        s = float(sum(c[r, k] for k, r in enumerate(rows)))
        if s > best:
            best, best_rows = s, rows
    pairs = sorted(zip(best_rows, range(n_cols)))
    return (np.array([p[0] for p in pairs], dtype=np.int64),
            np.array([p[1] for p in pairs], dtype=np.int64))


def sparse_inst_matcher_forward(outputs, targets, input_shape):
    pred_masks = outputs["pred_masks"]                        # (B, N, H, W)
    pred_logits_sig = jax.nn.sigmoid(outputs["pred_logits"])  # (B, N, num_classes)
    B, N, H, W = pred_masks.shape

    labels = [v["labels"] for v in targets]
    tgt_ids = (jnp.concatenate(labels) if len(labels) > 0
               else jnp.zeros((0,), jnp.int32))
    if tgt_ids.shape[0] == 0:
        empty = jnp.asarray([], dtype=pred_logits_sig.dtype)
        return [(empty, empty)] * B

    # nested_masks_from_list: zero-pad every image's masks to input_shape and concat
    padded = []
    for t in targets:
        m = t["masks"].astype(pred_masks.dtype)
        pad_h = input_shape[0] - m.shape[1]
        pad_w = input_shape[1] - m.shape[2]
        padded.append(jnp.pad(m, ((0, 0), (0, pad_h), (0, pad_w))))
    tgt_masks = jnp.concatenate(padded, axis=0)               # (T, Hin, Win)

    # F.interpolate(..., mode='bilinear', align_corners=False) equivalent (no antialias).
    tgt_masks = jax.image.resize(tgt_masks, (tgt_masks.shape[0], H, W),
                                 method="bilinear", antialias=False)

    C = compute_cost_matrix(pred_masks, pred_logits_sig, tgt_masks, tgt_ids)
    C = jax.block_until_ready(C)
    C_np = np.asarray(C)                                      # (B, N, T)

    sizes = [int(v["masks"].shape[0]) for v in targets]
    indices = []
    col = 0
    for i, s in enumerate(sizes):
        c_i = C_np[i, :, col:col + s]                         # (N, s)
        row_ind, col_ind = _linear_sum_assignment_max(c_i)
        indices.append((row_ind, col_ind))
        col += s
    return indices


if __name__ == "__main__":
    B, N, H, W = 2, 8, 16, 16
    num_classes = 4
    input_shape = (32, 32)

    key = jax.random.PRNGKey(0)
    k1, k2, k3, k4, k5, k6 = jax.random.split(key, 6)

    outputs = {
        "pred_masks": jax.random.normal(k1, (B, N, H, W), jnp.float32),
        "pred_logits": jax.random.normal(k2, (B, N, num_classes), jnp.float32),
    }
    targets = [
        {
            "masks": (jax.random.uniform(k3, (2, input_shape[0], input_shape[1])) > 0.5
                      ).astype(jnp.float32),
            "labels": jax.random.randint(k5, (2,), 0, num_classes),
        },
        {
            "masks": (jax.random.uniform(k4, (3, input_shape[0], input_shape[1])) > 0.5
                      ).astype(jnp.float32),
            "labels": jax.random.randint(k6, (3,), 0, num_classes),
        },
    ]

    indices = sparse_inst_matcher_forward(outputs, targets, input_shape)
    assert len(indices) == B
    for (r, c) in indices:
        assert r.dtype == np.int64 and c.dtype == np.int64
        assert r.shape == c.shape
    print("KERNEL_OK")
</pallas_src>

<mosaic_0001>
module attributes {stable_mosaic.version = 11 : i64} {
  func.func @_matcher_kernel(%arg0: i32, %arg1: i32, %arg2: memref<16x256xf32, #tpu.memory_space<vmem>>, %arg3: memref<128x256xbf16, #tpu.memory_space<vmem>>, %arg4: memref<16x128xf32, #tpu.memory_space<vmem>>, %arg5: memref<1x128xf32, #tpu.memory_space<vmem>>, %arg6: memref<16x128xf32, #tpu.memory_space<vmem>>, %arg7: memref<16x128xf32, #tpu.memory_space<vmem>>, %arg8: memref<16x1xf32, #tpu.memory_space<vmem>>) attributes {dimension_semantics = [#tpu.dimension_semantics<parallel>, #tpu.dimension_semantics<arbitrary>], iteration_bounds = array<i64: 1, 1>, scalar_prefetch = 0 : i64, scratch_operands = 2 : i64, tpu.core_type = #tpu.core_type<tc>, window_params = [{transform_indices = @transform_0, window_bounds = array<i64: 16, 256>}, {transform_indices = @transform_1, window_bounds = array<i64: 128, 256>}, {transform_indices = @transform_2, window_bounds = array<i64: 16, 128>}, {pipeline_mode = #tpu.pipeline_mode<synchronous>, transform_indices = @transform_3, window_bounds = array<i64: 1, 128>}, {transform_indices = @transform_4, window_bounds = array<i64: 16, 128>}]} {
    %c0_i32 = arith.constant 0 : i32
    %0 = arith.cmpi eq, %arg1, %c0_i32 : i32
    %1 = arith.extui %0 : i1 to i32
    %c0_i32_0 = arith.constant 0 : i32
    %2 = arith.cmpi ne, %1, %c0_i32_0 : i32
    scf.if %2 {
      %cst_16 = arith.constant 0.000000e+00 : f32
      %24 = vector.broadcast %cst_16 : f32 to vector<16x128xf32>
      %c0_17 = arith.constant 0 : index
      %c0_18 = arith.constant 0 : index
      %25 = vector.load %arg7[%c0_17, %c0_18] : memref<16x128xf32, #tpu.memory_space<vmem>>, vector<16x128xf32>
      tpu.vector_store %arg7[%c0_17, %c0_18], %24 {strides = array<i32>} : memref<16x128xf32, #tpu.memory_space<vmem>>, vector<16x128xf32>,
      %cst_19 = arith.constant 0.000000e+00 : f32
      %26 = vector.broadcast %cst_19 : f32 to vector<16x1xf32>
      %c0_20 = arith.constant 0 : index
      %c0_21 = arith.constant 0 : index
      %27 = vector.load %arg8[%c0_20, %c0_21] : memref<16x1xf32, #tpu.memory_space<vmem>>, vector<16x1xf32>
      tpu.vector_store %arg8[%c0_20, %c0_21], %26 {strides = array<i32>} : memref<16x1xf32, #tpu.memory_space<vmem>>, vector<16x1xf32>,
    } else {
    }
    %c0 = arith.constant 0 : index
    %c0_1 = arith.constant 0 : index
    %3 = vector.load %arg2[%c0, %c0_1] : memref<16x256xf32, #tpu.memory_space<vmem>>, vector<16x256xf32>
    %4 = arith.negf %3 : vector<16x256xf32>
    %5 = math.exp %4 : vector<16x256xf32>
    %cst = arith.constant 1.000000e+00 : f32
    %6 = vector.broadcast %cst : f32 to vector<16x256xf32>
    %7 = arith.addf %6, %5 : vector<16x256xf32>
    %8 = arith.divf %6, %7 : vector<16x256xf32>
    %9 = arith.truncf %8 : vector<16x256xf32> to vector<16x256xbf16>
    %c0_2 = arith.constant 0 : index
    %c0_3 = arith.constant 0 : index
    %10 = vector.load %arg8[%c0_2, %c0_3] : memref<16x1xf32, #tpu.memory_space<vmem>>, vector<16x1xf32>
    %11 = arith.mulf %8, %8 : vector<16x256xf32>
    %cst_4 = arith.constant dense<0.000000e+00> : vector<16xf32>
    %12 = vector.multi_reduction <add>, %11, %cst_4 [1] : vector<16x256xf32> to vector<16xf32>
    %13 = vector.shape_cast %12 : vector<16xf32> to vector<16x1xf32>
    %14 = arith.addf %10, %13 : vector<16x1xf32>
    %c0_5 = arith.constant 0 : index
    %c0_6 = arith.constant 0 : index
    %15 = vector.load %arg8[%c0_5, %c0_6] : memref<16x1xf32, #tpu.memory_space<vmem>>, vector<16x1xf32>
    tpu.vector_store %arg8[%c0_5, %c0_6], %14 {strides = array<i32>} : memref<16x1xf32, #tpu.memory_space<vmem>>, vector<16x1xf32>,
    %c0_7 = arith.constant 0 : index
    %c0_8 = arith.constant 0 : index
    %16 = vector.load %arg7[%c0_7, %c0_8] : memref<16x128xf32, #tpu.memory_space<vmem>>, vector<16x128xf32>
    %c0_9 = arith.constant 0 : index
    %c0_10 = arith.constant 0 : index
    %17 = vector.load %arg3[%c0_9, %c0_10] : memref<128x256xbf16, #tpu.memory_space<vmem>>, vector<128x256xbf16>
    %cst_11 = arith.constant dense<0.000000e+00> : vector<16x128xf32>
    %18 = tpu.matmul %9, %17, %cst_11 {dimension_numbers = #tpu.dot_dimension_numbers<[1], [1], [0], [0], [0, 0, 1, 0], [], []>} : vector<16x256xbf16>, vector<128x256xbf16>, vector<16x128xf32> -> vector<16x128xf32>
    %19 = arith.addf %16, %18 : vector<16x128xf32>
    %c0_12 = arith.constant 0 : index
    %c0_13 = arith.constant 0 : index
    %20 = vector.load %arg7[%c0_12, %c0_13] : memref<16x128xf32, #tpu.memory_space<vmem>>, vector<16x128xf32>
    tpu.vector_store %arg7[%c0_12, %c0_13], %19 {strides = array<i32>} : memref<16x128xf32, #tpu.memory_space<vmem>>, vector<16x128xf32>,
    %c0_i32_14 = arith.constant 0 : i32
    %21 = arith.cmpi eq, %arg1, %c0_i32_14 : i32
    %22 = arith.extui %21 : i1 to i32
    %c0_i32_15 = arith.constant 0 : i32
    %23 = arith.cmpi ne, %22, %c0_i32_15 : i32
    scf.if %23 {
      %c0_16 = arith.constant 0 : index
      %c0_17 = arith.constant 0 : index
      %24 = vector.load %arg8[%c0_16, %c0_17] : memref<16x1xf32, #tpu.memory_space<vmem>>, vector<16x1xf32>
      %c0_18 = arith.constant 0 : index
      %c0_19 = arith.constant 0 : index
      %25 = vector.load %arg5[%c0_18, %c0_19] : memref<1x128xf32, #tpu.memory_space<vmem>>, vector<1x128xf32>
      %26 = vector.broadcast %24 : vector<16x1xf32> to vector<16x128xf32>
      %27 = vector.broadcast %25 : vector<1x128xf32> to vector<16x128xf32>
      %28 = arith.addf %26, %27 : vector<16x128xf32>
      %cst_20 = arith.constant 9.99999974E-5 : f32
      %29 = vector.broadcast %cst_20 : f32 to vector<16x128xf32>
      %30 = arith.addf %28, %29 : vector<16x128xf32>
      %c0_21 = arith.constant 0 : index
      %c0_22 = arith.constant 0 : index
      %31 = vector.load %arg7[%c0_21, %c0_22] : memref<16x128xf32, #tpu.memory_space<vmem>>, vector<16x128xf32>
      %cst_23 = arith.constant 2.000000e+00 : f32
      %32 = vector.broadcast %cst_23 : f32 to vector<16x128xf32>
      %33 = arith.mulf %32, %31 : vector<16x128xf32>
      %34 = tpu.reciprocal %30 {approx = true} : vector<16x128xf32> -> vector<16x128xf32>
      %35 = arith.mulf %33, %34 : vector<16x128xf32>
      %36 = math.log %35 : vector<16x128xf32>
      %cst_24 = arith.constant 8.000000e-01 : f32
      %37 = vector.broadcast %cst_24 : f32 to vector<16x128xf32>
      %38 = arith.mulf %37, %36 : vector<16x128xf32>
      %c0_25 = arith.constant 0 : index
      %c0_26 = arith.constant 0 : index
      %39 = vector.load %arg4[%c0_25, %c0_26] : memref<16x128xf32, #tpu.memory_space<vmem>>, vector<16x128xf32>
      %40 = math.log %39 : vector<16x128xf32>
      %cst_27 = arith.constant 2.000000e-01 : f32
      %41 = vector.broadcast %cst_27 : f32 to vector<16x128xf32>
      %42 = arith.mulf %41, %40 : vector<16x128xf32>
      %43 = arith.addf %38, %42 : vector<16x128xf32>
      %44 = math.exp %43 : vector<16x128xf32>
      %c0_28 = arith.constant 0 : index
      %c0_29 = arith.constant 0 : index
      %45 = vector.load %arg6[%c0_28, %c0_29] : memref<16x128xf32, #tpu.memory_space<vmem>>, vector<16x128xf32>
      tpu.vector_store %arg6[%c0_28, %c0_29], %44 {strides = array<i32>} : memref<16x128xf32, #tpu.memory_space<vmem>>, vector<16x128xf32>,
    } else {
    }
    return
  }
  func.func @transform_0(%arg0: i32, %arg1: i32) -> (i32, i32) {
    %c0_i32 = arith.constant 0 : i32
    return %arg0, %arg1 : i32, i32
  }
  func.func @transform_1(%arg0: i32, %arg1: i32) -> (i32, i32) {
    %c0_i32 = arith.constant 0 : i32
    %c0_i32_0 = arith.constant 0 : i32
    return %c0_i32, %arg1 : i32, i32
  }
  func.func @transform_2(%arg0: i32, %arg1: i32) -> (i32, i32) {
    %c0_i32 = arith.constant 0 : i32
    %c0_i32_0 = arith.constant 0 : i32
    return %arg0, %c0_i32 : i32, i32
  }
  func.func @transform_3(%arg0: i32, %arg1: i32) -> (i32, i32) {
    %c0_i32 = arith.constant 0 : i32
    %c0_i32_0 = arith.constant 0 : i32
    %c0_i32_1 = arith.constant 0 : i32
    return %c0_i32, %c0_i32_0 : i32, i32
  }
  func.func @transform_4(%arg0: i32, %arg1: i32) -> (i32, i32) {
    %c0_i32 = arith.constant 0 : i32
    %c0_i32_0 = arith.constant 0 : i32
    return %arg0, %c0_i32 : i32, i32
  }
}

</mosaic_0001>

<llo_original>
// kernel: tpu_custom_call.1
$region0: #{tpu_custom_call.1}
  #allocation0 [shape = 'u32[]', space=smem, size = 0x4, offset = 0x4, fixed_abs, tag = 'smem constant byte address 0x4 - core index']
  #allocation1 [shape = 'u32[72,128]{1,0:T(1,128)}', space=vmem, size = 0x9000, scoped, tag = 'internal scratch']
  #allocation2 [shape = 'f32[16,128]{1,0:T(8,128)}', space=vmem, size = 0x2000, scoped, tag = 'scratch operand']
  #allocation3 [shape = 'f32[16,1]{1,0:T(8,128)}', space=vmem, size = 0x2000, scoped, tag = 'scratch operand']
  %s0 = inlined_call_operand.hbm [shape: f32[16,256], index: 0, kind: input, shape index: {}]
  %s1 = inlined_call_operand.hbm [shape: bf16[128,256], index: 1, kind: input, shape index: {}]
  %s2 = inlined_call_operand.hbm [shape: f32[16,128], index: 2, kind: input, shape index: {}]
  %s3 = inlined_call_operand.vmem [shape: f32[1,128], index: 3, kind: input, shape index: {}]
  %s4 = inlined_call_operand.hbm [shape: f32[16,128], index: 4, kind: output, shape index: {}]
  %s5 = sld [smem:[#allocation0]]
  $region46: #{tpu_custom_call.1} parent=0
    _
  %s7 = ssub.s32 1, %s5
  %s8 = scalar_select 0, %s7, %s5
  $region1: #{tpu_custom_call.1} parent=0
    #allocation4 [shape = 'u8[16384]{0}', space=vmem, size = 0x4000, scoped, tag = 'input window, operand 0, single buffered']
    #allocation5 [shape = 's32[1]{0}', space=sflag, size = 0x4, scoped, tag = 'scoped memory for tpu_custom_call.1']
    #allocation6 [shape = 's32[1]{0}', space=sflag, size = 0x4, scoped, tag = 'scoped memory for tpu_custom_call.1']
    #allocation7 [shape = 'u8[65536]{0}', space=vmem, size = 0x10000, scoped, tag = 'input window, operand 1, single buffered']
    #allocation8 [shape = 's32[1]{0}', space=sflag, size = 0x4, scoped, tag = 'scoped memory for tpu_custom_call.1']
    #allocation9 [shape = 'u8[8192]{0}', space=vmem, size = 0x2000, scoped, tag = 'input window, operand 2, single buffered']
    #allocation10 [shape = 'u8[8192]{0}', space=vmem, size = 0x2000, scoped, tag = 'output window, operand 0, single buffered']
    %9 = vsyncpa [#allocation5], 0
    %10 = vsyncpa [#allocation8], 0
    %11 = vsyncpa [#allocation6], 0
    // Predicated region
    $region2: #{tpu_custom_call.1} parent=1 // pred_check
      _
    $region3: #{tpu_custom_call.1} parent=1 // pred_check_branch
      %13 = sbr.rel (0) target = $region5
    $region4: #{tpu_custom_call.1} parent=1 // pred_region
      %15 = vsyncadd [#allocation5], 0
      %s16 = sshll.u32 %s0, 4
      %s17 = int_to_ptr.hbm [resolvable:$true] %s16
      %s18 = sshll.u32 [#allocation4], 4
      %s19 = int_to_ptr.vmem [resolvable:$true] %s18
      %24 = dma.hbm_to_vmem [thread:$0]  %s17, 512, %s19, [#allocation5], 256, 256, 16
    $region5: #{tpu_custom_call.1} parent=1 // pred_fallthru
      _
    // Predicated region
    $region6: #{tpu_custom_call.1} parent=1 // pred_check
      _
    $region7: #{tpu_custom_call.1} parent=1 // pred_check_branch
      %26 = sbr.rel (0) target = $region9
    $region8: #{tpu_custom_call.1} parent=1 // pred_region
      %28 = vsyncadd [#allocation8], 0
      %s29 = sshll.u32 %s1, 4
      %s30 = int_to_ptr.hbm [resolvable:$true] %s29
      %s31 = sshll.u32 [#allocation7], 4
      %s32 = int_to_ptr.vmem [resolvable:$true] %s31
      %37 = dma.hbm_to_vmem [thread:$0]  %s30, 2048, %s32, [#allocation8], 128, 128, 8
    $region9: #{tpu_custom_call.1} parent=1 // pred_fallthru
      _
    // Predicated region
    $region10: #{tpu_custom_call.1} parent=1 // pred_check
      _
    $region11: #{tpu_custom_call.1} parent=1 // pred_check_branch
      %39 = sbr.rel (0) target = $region13
    $region12: #{tpu_custom_call.1} parent=1 // pred_region
      %41 = vsyncadd [#allocation8], 0
      %s42 = sshll.u32 %s2, 4
      %s43 = int_to_ptr.hbm [resolvable:$true] %s42
      %s44 = sshll.u32 [#allocation9], 4
      %s45 = int_to_ptr.vmem [resolvable:$true] %s44
      %50 = dma.hbm_to_vmem [thread:$0]  %s43, 256, %s45, [#allocation8], 128, 128, 8
    $region13: #{tpu_custom_call.1} parent=1 // pred_fallthru
      _
    // Predicated region
    $region14: #{tpu_custom_call.1} parent=1 // pred_check
      _
    $region15: #{tpu_custom_call.1} parent=1 // pred_check_branch
      %52 = sbr.rel (0) target = $region17
    $region16: #{tpu_custom_call.1} parent=1 // pred_region
      _
    $region17: #{tpu_custom_call.1} parent=1 // pred_fallthru
      _
    // Predicated region
    $region18: #{tpu_custom_call.1} parent=1 // pred_check
      _
    $region19: #{tpu_custom_call.1} parent=1 // pred_check_branch
      %54 = sbr.rel (0) target = $region21
    $region20: #{tpu_custom_call.1} parent=1 // pred_region
      %56 = dma.done [#allocation5], 512
    $region21: #{tpu_custom_call.1} parent=1 // pred_fallthru
      _
    // Predicated region
    $region22: #{tpu_custom_call.1} parent=1 // pred_check
      _
    $region23: #{tpu_custom_call.1} parent=1 // pred_check_branch
      %58 = sbr.rel (0) target = $region25
    $region24: #{tpu_custom_call.1} parent=1 // pred_region
      %60 = dma.done [#allocation8], 2048
    $region25: #{tpu_custom_call.1} parent=1 // pred_fallthru
      _
    // Predicated region
    $region26: #{tpu_custom_call.1} parent=1 // pred_check
      _
    $region27: #{tpu_custom_call.1} parent=1 // pred_check_branch
      %62 = sbr.rel (0) target = $region29
    $region28: #{tpu_custom_call.1} parent=1 // pred_region
      %64 = dma.done [#allocation8], 256
    $region29: #{tpu_custom_call.1} parent=1 // pred_fallthru
      _
    %p65 = scmp.eq.s32.totalorder 0, 0
    // Predicated region
    $region30: #{tpu_custom_call.1} parent=1 // pred_check
      %p66 = pneg %p65
    $region31: #{tpu_custom_call.1} parent=1 // pred_check_branch
      %68 = sbr.rel (%p66) target = $region33
    $region32: #{tpu_custom_call.1} parent=1 // pred_region
      %69 = vst [vmem:[#allocation2] sm:$0xff] 0.0
      %70 = vst [vmem:[#allocation2 + $0x8] sm:$0xff] 0.0
      %vm71 = vcmask 7168
      %72 = vst.msk [vmem:[#allocation3] sm:$0xff] %vm71, 0.0
      %73 = vst.msk [vmem:[#allocation3 + $0x8] sm:$0xff] %vm71, 0.0
    $region33: #{tpu_custom_call.1} parent=1 // pred_fallthru
      _
    %v74 = vld [vmem:[#allocation4] sm:$0xff]
    %v75 = vld [vmem:[#allocation4 + $0x8] sm:$0xff]
    %v76 = vld [vmem:[#allocation4 + $0x10] sm:$0xff]
    %v77 = vld [vmem:[#allocation4 + $0x18] sm:$0xff]
    %v78 = vxor.u32 %v74, 2147483648
    %v79 = vxor.u32 %v75, 2147483648
    %v80 = vxor.u32 %v76, 2147483648
    %v81 = vxor.u32 %v77, 2147483648
    %v82 = vmul.f32 %v78, 1.442695
    %v83 = vpow.pop %v82
    %v84 = vmul.f32 %v79, 1.442695
    %v85 = vpow.pop %v84
    %v86 = vmul.f32 %v80, 1.442695
    %v87 = vpow.pop %v86
    %v88 = vmul.f32 %v81, 1.442695
    %v89 = vpow.pop %v88
    %v90 = vadd.f32 %v83, 1.0
    %v91 = vadd.f32 %v85, 1.0
    %v92 = vadd.f32 %v87, 1.0
    %v93 = vadd.f32 %v89, 1.0
    %v94 = vrcp.pop %v90
    %v95 = vmul.f32 %v90, %v94
    %v96 = vsub.f32 1.0, %v95
    %v97 = vmul.f32 %v94, %v96
    %v98 = vadd.f32 %v94, %v97
    %vm99 = vweird.f32 %v90
    %vm100 = vweird.f32 %v94
    %vm101 = vmor %vm99, %vm100
    %v102 = vsel %vm101, %v94, %v98
    %v103 = vand.u32 2147483647, %v90
    %vm104 = vcmp.eq.f32.partialorder %v103, 8.507059e+37
    %v105 = vand.u32 %v90, 2147483648
    %v106 = vor.u32 1.1754944e-38, %v105
    %v107 = vsel %vm104, %v106, %v102
    %v108 = vmul.f32 1.0, %v107
    %v109 = vrcp.pop %v91
    %v110 = vmul.f32 %v91, %v109
    %v111 = vsub.f32 1.0, %v110
    %v112 = vmul.f32 %v109, %v111
    %v113 = vadd.f32 %v109, %v112
    %vm114 = vweird.f32 %v91
    %vm115 = vweird.f32 %v109
    %vm116 = vmor %vm114, %vm115
    %v117 = vsel %vm116, %v109, %v113
    %v118 = vand.u32 2147483647, %v91
    %vm119 = vcmp.eq.f32.partialorder %v118, 8.507059e+37
    %v120 = vand.u32 %v91, 2147483648
    %v121 = vor.u32 1.1754944e-38, %v120
    %v122 = vsel %vm119, %v121, %v117
    %v123 = vmul.f32 1.0, %v122
    %v124 = vrcp.pop %v92
    %v125 = vmul.f32 %v92, %v124
    %v126 = vsub.f32 1.0, %v125
    %v127 = vmul.f32 %v124, %v126
    %v128 = vadd.f32 %v124, %v127
    %vm129 = vweird.f32 %v92
    %vm130 = vweird.f32 %v124
    %vm131 = vmor %vm129, %vm130
    %v132 = vsel %vm131, %v124, %v128
    %v133 = vand.u32 2147483647, %v92
    %vm134 = vcmp.eq.f32.partialorder %v133, 8.507059e+37
    %v135 = vand.u32 %v92, 2147483648
    %v136 = vor.u32 1.1754944e-38, %v135
    %v137 = vsel %vm134, %v136, %v132
    %v138 = vmul.f32 1.0, %v137
    %v139 = vrcp.pop %v93
    %v140 = vmul.f32 %v93, %v139
    %v141 = vsub.f32 1.0, %v140
    %v142 = vmul.f32 %v139, %v141
    %v143 = vadd.f32 %v139, %v142
    %vm144 = vweird.f32 %v93
    %vm145 = vweird.f32 %v139
    %vm146 = vmor %vm144, %vm145
    %v147 = vsel %vm146, %v139, %v143
    %v148 = vand.u32 2147483647, %v93
    %vm149 = vcmp.eq.f32.partialorder %v148, 8.507059e+37
    %v150 = vand.u32 %v93, 2147483648
    %v151 = vor.u32 1.1754944e-38, %v150
    %v152 = vsel %vm149, %v151, %v147
    %v153 = vmul.f32 1.0, %v152
    %v154 = vpack.c.bf16 %v138, %v108
    %v155 = vpack.c.bf16 %v153, %v123
    %v156 = vld [vmem:[#allocation3] sm:$0xff]
    %v157 = vld [vmem:[#allocation3 + $0x8] sm:$0xff]
    %v158 = vmul.f32 %v108, %v108
    %v159 = vmul.f32 %v123, %v123
    %v160 = vmul.f32 %v138, %v138
    %v161 = vmul.f32 %v153, %v153
    %v162 = vadd.f32 %v158, %v159
    %163 = vadd.xlane.f32.xlu0 %v162
    %v164 = vpop.xlane.xlu0 %163
    %v165 = vadd.f32 %v160, %v161
    %166 = vadd.xlane.f32.xlu0 %v165
    %v167 = vpop.xlane.xlu0 %166
    %v168 = vadd.f32 %v156, %v164
    %v169 = vadd.f32 %v157, %v167
    %vm170 = vcmask 7168
    %171 = vst.msk [vmem:[#allocation3] sm:$0xff] %vm170, %v168
    %172 = vst.msk [vmem:[#allocation3 + $0x8] sm:$0xff] %vm170, %v169
    %v173 = vld [vmem:[#allocation2] sm:$0xff]
    %v174 = vld [vmem:[#allocation2 + $0x8] sm:$0xff]
    %v175 = vld [vmem:[#allocation7] sm:$0xff]
    %v176 = vld [vmem:[#allocation7 + $0x8] sm:$0xff]
    %v177 = vld [vmem:[#allocation7 + $0x10] sm:$0xff]
    %v178 = vld [vmem:[#allocation7 + $0x18] sm:$0xff]
    %v179 = vld [vmem:[#allocation7 + $0x20] sm:$0xff]
    %v180 = vld [vmem:[#allocation7 + $0x28] sm:$0xff]
    %v181 = vld [vmem:[#allocation7 + $0x30] sm:$0xff]
    %v182 = vld [vmem:[#allocation7 + $0x38] sm:$0xff]
    %v183 = vld [vmem:[#allocation7 + $0x40] sm:$0xff]
    %v184 = vld [vmem:[#allocation7 + $0x48] sm:$0xff]
    %v185 = vld [vmem:[#allocation7 + $0x50] sm:$0xff]
    %v186 = vld [vmem:[#allocation7 + $0x58] sm:$0xff]
    %v187 = vld [vmem:[#allocation7 + $0x60] sm:$0xff]
    %v188 = vld [vmem:[#allocation7 + $0x68] sm:$0xff]
    %v189 = vld [vmem:[#allocation7 + $0x70] sm:$0xff]
    %v190 = vld [vmem:[#allocation7 + $0x78] sm:$0xff]
    %v207 = vunpack.c.l.b16 %v175
    %v208 = vunpack.c.h.b16 %v175
    %v209 = vunpack.c.l.b16 %v176
    %v210 = vunpack.c.h.b16 %v176
    %v211 = vunpack.c.l.b16 %v177
    %v212 = vunpack.c.h.b16 %v177
    %v213 = vunpack.c.l.b16 %v178
    %v214 = vunpack.c.h.b16 %v178
    %v215 = vunpack.c.l.b16 %v179
    %v216 = vunpack.c.h.b16 %v179
    %v217 = vunpack.c.l.b16 %v180
    %v218 = vunpack.c.h.b16 %v180
    %v219 = vunpack.c.l.b16 %v181
    %v220 = vunpack.c.h.b16 %v181
    %v221 = vunpack.c.l.b16 %v182
    %v222 = vunpack.c.h.b16 %v182
    %v223 = vunpack.c.l.b16 %v183
    %v224 = vunpack.c.h.b16 %v183
    %v225 = vunpack.c.l.b16 %v184
    %v226 = vunpack.c.h.b16 %v184
    %v227 = vunpack.c.l.b16 %v185
    %v228 = vunpack.c.h.b16 %v185
    %v229 = vunpack.c.l.b16 %v186
    %v230 = vunpack.c.h.b16 %v186
    %v231 = vunpack.c.l.b16 %v187
    %v232 = vunpack.c.h.b16 %v187
    %v233 = vunpack.c.l.b16 %v188
    %v234 = vunpack.c.h.b16 %v188
    %v235 = vunpack.c.l.b16 %v189
    %v236 = vunpack.c.h.b16 %v189
    %v237 = vunpack.c.l.b16 %v190
    %v238 = vunpack.c.h.b16 %v190
    %v239 = vpack.c.b16 %v209, %v207
    %v240 = vpack.c.b16 %v210, %v208
    %v241 = vpack.c.b16 %v213, %v211
    %v242 = vpack.c.b16 %v214, %v212
    %v243 = vpack.c.b16 %v217, %v215
    %v244 = vpack.c.b16 %v218, %v216
    %v245 = vpack.c.b16 %v221, %v219
    %v246 = vpack.c.b16 %v222, %v220
    %v247 = vpack.c.b16 %v225, %v223
    %v248 = vpack.c.b16 %v226, %v224
    %v249 = vpack.c.b16 %v229, %v227
    %v250 = vpack.c.b16 %v230, %v228
    %v251 = vpack.c.b16 %v233, %v231
    %v252 = vpack.c.b16 %v234, %v232
    %v253 = vpack.c.b16 %v237, %v235
    %v254 = vpack.c.b16 %v238, %v236
    %271 = vmatpush.bf16.xpose.msra.mxu0 %v253
    %272 = vmatpush.bf16.xpose.msra.mxu0 %v251
    %273 = vmatpush.bf16.xpose.msra.mxu0 %v249
    %274 = vmatpush.bf16.xpose.msra.mxu0 %v247
    %275 = vmatpush.bf16.xpose.msra.mxu0 %v245
    %276 = vmatpush.bf16.xpose.msra.mxu0 %v243
    %277 = vmatpush.bf16.xpose.msra.mxu0 %v241
    %278 = vmatpush.bf16.xpose.msra.mxu0 %v239
    %279 = vmatmul.bf16.gmra.mxu0 %v154
    %v280 = vpop.f32.mrf.mxu0
    %v281 = vadd.f32 0.0, %v280
    %v282 = vpop.f32.mrf.mxu0
    %v283 = vadd.f32 0.0, %v282
    %284 = vdwg.mxu0
    %285 = vmatpush.bf16.xpose.msra.mxu0 %v254
    %286 = vmatpush.bf16.xpose.msra.mxu0 %v252
    %287 = vmatpush.bf16.xpose.msra.mxu0 %v250
    %288 = vmatpush.bf16.xpose.msra.mxu0 %v248
    %289 = vmatpush.bf16.xpose.msra.mxu0 %v246
    %290 = vmatpush.bf16.xpose.msra.mxu0 %v244
    %291 = vmatpush.bf16.xpose.msra.mxu0 %v242
    %292 = vmatpush.bf16.xpose.msra.mxu0 %v240
    %293 = vmatmul.bf16.gmra.mxu0 %v155
    %v294 = vpop.f32.mrf.mxu0
    %v295 = vadd.f32 %v281, %v294
    %v296 = vpop.f32.mrf.mxu0
    %v297 = vadd.f32 %v283, %v296
    %298 = vdwg.mxu0
    %v299 = vadd.f32 %v173, %v295
    %v300 = vadd.f32 %v174, %v297
    %301 = vst [vmem:[#allocation2] sm:$0xff] %v299
    %302 = vst [vmem:[#allocation2 + $0x8] sm:$0xff] %v300
    // Predicated region
    $region34: #{tpu_custom_call.1} parent=1 // pred_check
      %p303 = pneg %p65
    $region35: #{tpu_custom_call.1} parent=1 // pred_check_branch
      %305 = sbr.rel (%p303) target = $region37
    $region36: #{tpu_custom_call.1} parent=1 // pred_region
      %v306 = vld [vmem:[#allocation3] sm:$0xff]
      %v307 = vld [vmem:[#allocation3 + $0x8] sm:$0xff]
      %v308 = vld [vmem:[%s3] sm:$0x1]
      %310 = vset.pattern.permute.xlu0 0
      %311 = vperm.xlu0 %310, %v306
      %v312 = vpop.permute.xlu0 %311
      %315 = vset.pattern.permute.xlu0 0
      %316 = vperm.xlu0 %315, %v307
      %v317 = vpop.permute.xlu0 %316
      %v320 = vperm.slane %v308, 0
      %v322 = vadd.f32 %v312, %v320
      %v323 = vadd.f32 %v317, %v320
      %v324 = vadd.f32 %v322, 0.0001
      %v325 = vadd.f32 %v323, 0.0001
      %v326 = vld [vmem:[#allocation2] sm:$0xff]
      %v327 = vld [vmem:[#allocation2 + $0x8] sm:$0xff]
      %v328 = vmul.f32 %v326, 2.0
      %v329 = vmul.f32 %v327, 2.0
      %v330 = vrcp.pop %v324
      %v331 = vrcp.pop %v325
      %v332 = vmul.f32 %v328, %v330
      %v333 = vmul.f32 %v329, %v331
      %v334 = vlog2.pop %v332
      %v335 = vmul.f32 %v334, 0.6931472
      %v336 = vlog2.pop %v333
      %v337 = vmul.f32 %v336, 0.6931472
      %v338 = vmul.f32 %v335, 0.8
      %v339 = vmul.f32 %v337, 0.8
      %v340 = vld [vmem:[#allocation9] sm:$0xff]
      %v341 = vld [vmem:[#allocation9 + $0x8] sm:$0xff]
      %v342 = vlog2.pop %v340
      %v343 = vmul.f32 %v342, 0.6931472
      %v344 = vlog2.pop %v341
      %v345 = vmul.f32 %v344, 0.6931472
      %v346 = vmul.f32 %v343, 0.2
      %v347 = vmul.f32 %v345, 0.2
      %v348 = vadd.f32 %v338, %v346
      %v349 = vadd.f32 %v339, %v347
      %v350 = vmul.f32 %v348, 1.442695
      %v351 = vpow.pop %v350
      %v352 = vmul.f32 %v349, 1.442695
      %v353 = vpow.pop %v352
      %354 = vst [vmem:[#allocation10] sm:$0xff] %v351
      %355 = vst [vmem:[#allocation10 + $0x8] sm:$0xff] %v353
    $region37: #{tpu_custom_call.1} parent=1 // pred_fallthru
      _
    // Predicated region
    $region38: #{tpu_custom_call.1} parent=1 // pred_check
      _
    $region39: #{tpu_custom_call.1} parent=1 // pred_check_branch
      %357 = sbr.rel (0) target = $region41
    $region40: #{tpu_custom_call.1} parent=1 // pred_region
      %359 = vsyncadd [#allocation6], 0
      %s360 = sshll.u32 [#allocation10], 4
      %s361 = int_to_ptr.vmem [resolvable:$true] %s360
      %s362 = sshll.u32 %s4, 4
      %s363 = int_to_ptr.hbm [resolvable:$true] %s362
      %368 = dma.vmem_to_hbm [thread:$0]  %s361, 256, %s363, [#allocation6], 128, 128, 8
    $region41: #{tpu_custom_call.1} parent=1 // pred_fallthru
      _
    // Predicated region
    $region42: #{tpu_custom_call.1} parent=1 // pred_check
      _
    $region43: #{tpu_custom_call.1} parent=1 // pred_check_branch
      %370 = sbr.rel (0) target = $region45
    $region44: #{tpu_custom_call.1} parent=1 // pred_region
      %372 = dma.done [#allocation6], 256
    $region45: #{tpu_custom_call.1} parent=1 // pred_fallthru
      _
    %373 = vsyncpa [#allocation5], 1
    %374 = vsyncpa [#allocation8], 1
    %375 = vsyncpa [#allocation6], 1

</llo_original>
